<compile_context>
chip_gen: v6e
topology: v6e:2x2x1
jax: 0.10.0
libtpu: 0.0.40
codegen_flags: <defaults>
</compile_context>

<pallas_src>
import functools
import math

import jax
import jax.numpy as jnp
from jax.experimental import pallas as pl
from jax.experimental.pallas import tpu as pltpu

LANE = 128      # vreg lane width  -> last dim padded to a multiple of this
SUBLANE = 8     # vreg sublanes    -> second-to-last dim padded to a multiple of this
TM_TARGET = 256 # batch-tile rows per grid step (good MXU M-fill on v6e/v7x)
VMEM_CAP = 64 << 20  # smallest physical VMEM (v7x); never ask for more


def _round_up(n, m):
    return ((n + m - 1) // m) * m


def _make_fused_mlp_kernel(n_linear, emit_hidden):
    """Fused kernel over `n_linear` (Linear -> relu6) layers for ONE batch tile.

    Ref order: (x, w0, b0, w1, b1, ..., out[, last_hidden]).
    Intermediate activations live entirely in VMEM/vregs; the last hidden
    activation is written to a second output only when `emit_hidden` is True.
    """

    def kernel(*refs):
        x_ref = refs[0]
        wb = refs[1:1 + 2 * n_linear]
        o_ref = refs[1 + 2 * n_linear]
        h_ref = refs[2 + 2 * n_linear] if emit_hidden else None

        compute_dtype = x_ref.dtype
        h = x_ref[...]
        y = None
        for i in range(n_linear):
            w = wb[2 * i][...]          # bf16, VMEM-resident across batch tiles
            b = wb[2 * i + 1][...]      # f32 bias
            # MXU matmul (bf16 inputs, f32 accumulate); bias + relu6 fused epilogue.
            y = jnp.dot(h, w, preferred_element_type=jnp.float32)
            y = jnp.clip(y + b, 0.0, 6.0)
            if emit_hidden and i == n_linear - 2:
                h_ref[...] = y.astype(h_ref.dtype)
            if i < n_linear - 1:
                h = y.astype(compute_dtype)   # stay MXU-native for the next layer
        o_ref[...] = y.astype(o_ref.dtype)

    return kernel


def _fused_mlp(x_pad, params, emit_hidden, hidden_pad, tm):
    """One pallas_call over the whole (padded) MLP, tiled over the batch axis."""
    B_pad, Din_pad = x_pad.shape
    n_linear = len(params)
    Dout_pad = params[-1][0].shape[1]
    out_dtype = jnp.bfloat16          # clipped to [0,6] -> bf16 error is tiny
    n_tiles = B_pad // tm

    kernel = _make_fused_mlp_kernel(n_linear, emit_hidden)

    args = [x_pad]
    # Streamed input tile: (tm, Din_pad) marching down the batch axis.
    # TODO(synk): if profiling shows the x DMA exposed at large batch, add
    # pipeline_mode=pl.Buffered(3) on this spec only.
    in_specs = [pl.BlockSpec((tm, Din_pad), lambda i: (i, 0))]
    for w, b in params:
        args += [w, b]
        # Weights/biases: same block every grid step -> stay VMEM-resident.
        in_specs += [pl.BlockSpec(w.shape, lambda i: (0, 0)),
                     pl.BlockSpec(b.shape, lambda i: (0, 0))]

    out_shapes = [jax.ShapeDtypeStruct((B_pad, Dout_pad), out_dtype)]
    out_specs = [pl.BlockSpec((tm, Dout_pad), lambda i: (i, 0))]
    if emit_hidden:
        out_shapes.append(jax.ShapeDtypeStruct((B_pad, hidden_pad), out_dtype))
        out_specs.append(pl.BlockSpec((tm, hidden_pad), lambda i: (i, 0)))

    # VMEM budget: resident weights + double-buffered x / out tiles + headroom.
    # TODO(synk): if resident weights alone exceed ~28 MiB, stream weights per
    # layer (layer grid axis / emit_pipeline) instead of keeping all resident.
    weight_bytes = sum(w.size * w.dtype.itemsize + b.size * b.dtype.itemsize
                       for w, b in params)
    tile_bytes = tm * Din_pad * x_pad.dtype.itemsize
    tile_bytes += sum(tm * s.shape[1] * s.dtype.itemsize for s in out_shapes)
    vmem_limit = int(min(max(weight_bytes + 2 * tile_bytes + (8 << 20), 32 << 20),
                         VMEM_CAP))

    # Advisory cost hint so XLA can schedule around the custom call.
    flops = sum(2 * B_pad * w.shape[0] * w.shape[1] for w, _ in params)
    bytes_accessed = x_pad.size * x_pad.dtype.itemsize + weight_bytes
    bytes_accessed += sum(math.prod(s.shape) * s.dtype.itemsize for s in out_shapes)

    return pl.pallas_call(
        kernel,
        grid=(n_tiles,),
        out_shape=tuple(out_shapes),
        in_specs=in_specs,
        out_specs=tuple(out_specs),
        compiler_params=pltpu.CompilerParams(
            dimension_semantics=("parallel",),   # 2-TC sharding on v7x
            vmem_limit_bytes=vmem_limit),
        cost_estimate=pl.CostEstimate(
            flops=flops, transcendentals=0, bytes_accessed=bytes_accessed),
    )(*args)


def init_mlp_params(key, inp, outp, layers=1, dims=(64,), compute_dtype=jnp.bfloat16):
    """nn.Linear-style init U(-1/sqrt(in), 1/sqrt(in)).

    Weights stored as (in_features, out_features), zero-padded to 128-multiple
    feature dims (lane-dense) once at init, weights cast to `compute_dtype`
    (bf16 -> MXU-native), biases kept in f32 (tiny; added in the f32 epilogue).
    Zero padding is exact: padded rows/cols contribute 0 and relu6(0+0)=0.
    Note: on v6e/v7x (2x256^2 MXU) hidden widths that are multiples of 256
    fill the array better than 128-multiples; that's a model-config choice.
    """
    assert layers == len(dims)
    sizes = []
    for i in range(layers):
        in_size = dims[i - 1] if i > 0 else inp
        sizes.append((in_size, dims[i]))
    final_inp = inp if layers == 0 else dims[-1]
    sizes.append((final_inp, outp))

    params = []
    for in_size, out_size in sizes:
        key, kw, kb = jax.random.split(key, 3)
        bound = 1.0 / math.sqrt(in_size)
        w = jax.random.uniform(kw, (in_size, out_size), jnp.float32, -bound, bound)
        b = jax.random.uniform(kb, (1, out_size), jnp.float32, -bound, bound)
        in_pad, out_pad = _round_up(in_size, LANE), _round_up(out_size, LANE)
        w_pad = jnp.zeros((in_pad, out_pad), jnp.float32).at[:in_size, :out_size].set(w)
        b_pad = jnp.zeros((1, out_pad), jnp.float32).at[:, :out_size].set(b)
        params.append((w_pad.astype(compute_dtype), b_pad))   # bias stays f32
    return params


@functools.partial(jax.jit, static_argnames=("outp", "dims", "return_activations"))
def mlp_forward(x, params, *, outp, dims=(), return_activations=False):
    """Matches MLP.forward: hidden (Linear -> relu6) blocks, then final Linear -> relu6."""
    params = list(params)
    B, Din = x.shape
    Din_pad = params[0][0].shape[0]
    compute_dtype = params[0][0].dtype

    # Batch tile: full (padded) batch if it fits in one tile, else TM_TARGET rows.
    if B <= TM_TARGET:
        tm = _round_up(B, SUBLANE)
        B_pad = tm
    else:
        tm = TM_TARGET
        B_pad = _round_up(B, tm)

    # jnp.pad (fusable) instead of zeros().at[].set(); padded rows/cols are inert.
    x_pad = jnp.pad(x.astype(compute_dtype),
                    ((0, B_pad - B), (0, Din_pad - Din)))

    emit_hidden = return_activations and len(params) >= 2
    hidden_pad = params[-1][0].shape[0] if emit_hidden else 0  # padded dims[-1]

    outs = _fused_mlp(x_pad, params, emit_hidden, hidden_pad, tm)

    out = outs[0][:B, :outp].astype(jnp.float32)
    if not return_activations:
        return out
    last_hidden = (outs[1][:B, :dims[-1]].astype(jnp.float32)
                   if emit_hidden else None)
    return out, last_hidden


if __name__ == "__main__":
    key = jax.random.PRNGKey(0)
    k_x, k_p = jax.random.split(key)

    batch, inp, outp = 8, 32, 16
    layers, dims = 1, (64,)

    x = jax.random.normal(k_x, (batch, inp), jnp.float32)
    params = init_mlp_params(k_p, inp, outp, layers=layers, dims=dims)

    out, last_hidden = mlp_forward(x, params, outp=outp, dims=dims,
                                   return_activations=True)
    out = jax.block_until_ready(out)
    last_hidden = jax.block_until_ready(last_hidden)

    # Pure-JAX reference mirroring the same bf16-input / f32-accumulate math.
    def ref_forward(x, params, outp, dims):
        dt = params[0][0].dtype
        h = jnp.zeros((x.shape[0], params[0][0].shape[0]), dt).at[:, :x.shape[1]].set(
            x.astype(dt))
        last_h = None
        y = None
        for i, (w, b) in enumerate(params):
            y = jnp.dot(h, w, preferred_element_type=jnp.float32)
            y = jnp.clip(y + b, 0.0, 6.0)
            if i == len(params) - 2:
                last_h = y[:, :dims[-1]]
            if i < len(params) - 1:
                h = y.astype(dt)
        return y[:, :outp], last_h

    ref_out, ref_h = ref_forward(x, params, outp, dims)
    assert out.shape == (batch, outp)
    assert last_hidden.shape == (batch, dims[-1])
    # bf16 matmul inputs + bf16 output store -> compare with a tolerance that is
    # loose vs. bf16 ULPs on [0, 6]-clipped values but tight vs. any real bug.
    assert jnp.allclose(out, ref_out, atol=5e-2, rtol=0.0), \
        float(jnp.max(jnp.abs(out - ref_out)))
    assert jnp.allclose(last_hidden, ref_h, atol=5e-2, rtol=0.0), \
        float(jnp.max(jnp.abs(last_hidden - ref_h)))

    print("KERNEL_OK")
</pallas_src>

<mosaic_0001>
module attributes {stable_mosaic.version = 11 : i64} {
  func.func @kernel(%arg0: i32, %arg1: memref<8x128xbf16, #tpu.memory_space<vmem>>, %arg2: memref<128x128xbf16, #tpu.memory_space<vmem>>, %arg3: memref<1x128xf32, #tpu.memory_space<vmem>>, %arg4: memref<128x128xbf16, #tpu.memory_space<vmem>>, %arg5: memref<1x128xf32, #tpu.memory_space<vmem>>, %arg6: memref<8x128xbf16, #tpu.memory_space<vmem>>, %arg7: memref<8x128xbf16, #tpu.memory_space<vmem>>) attributes {dimension_semantics = [#tpu.dimension_semantics<parallel>], iteration_bounds = array<i64: 1>, scalar_prefetch = 0 : i64, scratch_operands = 0 : i64, tpu.core_type = #tpu.core_type<tc>, window_params = [{transform_indices = @transform_0, window_bounds = array<i64: 8, 128>}, {pipeline_mode = #tpu.pipeline_mode<synchronous>, transform_indices = @transform_1, window_bounds = array<i64: 128, 128>}, {pipeline_mode = #tpu.pipeline_mode<synchronous>, transform_indices = @transform_2, window_bounds = array<i64: 1, 128>}, {pipeline_mode = #tpu.pipeline_mode<synchronous>, transform_indices = @transform_3, window_bounds = array<i64: 128, 128>}, {pipeline_mode = #tpu.pipeline_mode<synchronous>, transform_indices = @transform_4, window_bounds = array<i64: 1, 128>}, {transform_indices = @transform_5, window_bounds = array<i64: 8, 128>}, {transform_indices = @transform_6, window_bounds = array<i64: 8, 128>}]} {
    %c0 = arith.constant 0 : index
    %c0_0 = arith.constant 0 : index
    %0 = vector.load %arg1[%c0, %c0_0] : memref<8x128xbf16, #tpu.memory_space<vmem>>, vector<8x128xbf16>
    %c0_1 = arith.constant 0 : index
    %c0_2 = arith.constant 0 : index
    %1 = vector.load %arg2[%c0_1, %c0_2] : memref<128x128xbf16, #tpu.memory_space<vmem>>, vector<128x128xbf16>
    %c0_3 = arith.constant 0 : index
    %c0_4 = arith.constant 0 : index
    %2 = vector.load %arg3[%c0_3, %c0_4] : memref<1x128xf32, #tpu.memory_space<vmem>>, vector<1x128xf32>
    %cst = arith.constant dense<0.000000e+00> : vector<8x128xf32>
    %3 = tpu.matmul %0, %1, %cst {dimension_numbers = #tpu.dot_dimension_numbers<[1], [0], [0], [1], [0, 0, 1, 1], [], []>} : vector<8x128xbf16>, vector<128x128xbf16>, vector<8x128xf32> -> vector<8x128xf32>
    %4 = vector.broadcast %2 : vector<1x128xf32> to vector<8x128xf32>
    %5 = arith.addf %3, %4 : vector<8x128xf32>
    %cst_5 = arith.constant 0.000000e+00 : f32
    %cst_6 = arith.constant 6.000000e+00 : f32
    %6 = vector.broadcast %cst_5 : f32 to vector<8x128xf32>
    %7 = arith.maximumf %6, %5 : vector<8x128xf32>
    %8 = vector.broadcast %cst_6 : f32 to vector<8x128xf32>
    %9 = arith.minimumf %8, %7 : vector<8x128xf32>
    %10 = arith.truncf %9 : vector<8x128xf32> to vector<8x128xbf16>
    %c0_7 = arith.constant 0 : index
    %c0_8 = arith.constant 0 : index
    %11 = vector.load %arg7[%c0_7, %c0_8] : memref<8x128xbf16, #tpu.memory_space<vmem>>, vector<8x128xbf16>
    tpu.vector_store %arg7[%c0_7, %c0_8], %10 {strides = array<i32>} : memref<8x128xbf16, #tpu.memory_space<vmem>>, vector<8x128xbf16>,
    %12 = arith.truncf %9 : vector<8x128xf32> to vector<8x128xbf16>
    %c0_9 = arith.constant 0 : index
    %c0_10 = arith.constant 0 : index
    %13 = vector.load %arg4[%c0_9, %c0_10] : memref<128x128xbf16, #tpu.memory_space<vmem>>, vector<128x128xbf16>
    %c0_11 = arith.constant 0 : index
    %c0_12 = arith.constant 0 : index
    %14 = vector.load %arg5[%c0_11, %c0_12] : memref<1x128xf32, #tpu.memory_space<vmem>>, vector<1x128xf32>
    %cst_13 = arith.constant dense<0.000000e+00> : vector<8x128xf32>
    %15 = tpu.matmul %12, %13, %cst_13 {dimension_numbers = #tpu.dot_dimension_numbers<[1], [0], [0], [1], [0, 0, 1, 1], [], []>} : vector<8x128xbf16>, vector<128x128xbf16>, vector<8x128xf32> -> vector<8x128xf32>
    %16 = vector.broadcast %14 : vector<1x128xf32> to vector<8x128xf32>
    %17 = arith.addf %15, %16 : vector<8x128xf32>
    %cst_14 = arith.constant 0.000000e+00 : f32
    %cst_15 = arith.constant 6.000000e+00 : f32
    %18 = vector.broadcast %cst_14 : f32 to vector<8x128xf32>
    %19 = arith.maximumf %18, %17 : vector<8x128xf32>
    %20 = vector.broadcast %cst_15 : f32 to vector<8x128xf32>
    %21 = arith.minimumf %20, %19 : vector<8x128xf32>
    %22 = arith.truncf %21 : vector<8x128xf32> to vector<8x128xbf16>
    %c0_16 = arith.constant 0 : index
    %c0_17 = arith.constant 0 : index
    %23 = vector.load %arg6[%c0_16, %c0_17] : memref<8x128xbf16, #tpu.memory_space<vmem>>, vector<8x128xbf16>
    tpu.vector_store %arg6[%c0_16, %c0_17], %22 {strides = array<i32>} : memref<8x128xbf16, #tpu.memory_space<vmem>>, vector<8x128xbf16>,
    return
  }
  func.func @transform_0(%arg0: i32) -> (i32, i32) {
    %c0_i32 = arith.constant 0 : i32
    %c0_i32_0 = arith.constant 0 : i32
    return %arg0, %c0_i32 : i32, i32
  }
  func.func @transform_1(%arg0: i32) -> (i32, i32) {
    %c0_i32 = arith.constant 0 : i32
    %c0_i32_0 = arith.constant 0 : i32
    %c0_i32_1 = arith.constant 0 : i32
    return %c0_i32, %c0_i32_0 : i32, i32
  }
  func.func @transform_2(%arg0: i32) -> (i32, i32) {
    %c0_i32 = arith.constant 0 : i32
    %c0_i32_0 = arith.constant 0 : i32
    %c0_i32_1 = arith.constant 0 : i32
    return %c0_i32, %c0_i32_0 : i32, i32
  }
  func.func @transform_3(%arg0: i32) -> (i32, i32) {
    %c0_i32 = arith.constant 0 : i32
    %c0_i32_0 = arith.constant 0 : i32
    %c0_i32_1 = arith.constant 0 : i32
    return %c0_i32, %c0_i32_0 : i32, i32
  }
  func.func @transform_4(%arg0: i32) -> (i32, i32) {
    %c0_i32 = arith.constant 0 : i32
    %c0_i32_0 = arith.constant 0 : i32
    %c0_i32_1 = arith.constant 0 : i32
    return %c0_i32, %c0_i32_0 : i32, i32
  }
  func.func @transform_5(%arg0: i32) -> (i32, i32) {
    %c0_i32 = arith.constant 0 : i32
    %c0_i32_0 = arith.constant 0 : i32
    return %arg0, %c0_i32 : i32, i32
  }
  func.func @transform_6(%arg0: i32) -> (i32, i32) {
    %c0_i32 = arith.constant 0 : i32
    %c0_i32_0 = arith.constant 0 : i32
    return %arg0, %c0_i32 : i32, i32
  }
}

</mosaic_0001>

<llo_original>
// kernel: mlp_forward.1
$region0: #{mlp_forward.1}
  #allocation0 [shape = 'u32[]', space=smem, size = 0x4, offset = 0x4, fixed_abs, tag = 'smem constant byte address 0x4 - core index']
  #allocation1 [shape = 'u32[144,128]{1,0:T(1,128)}', space=vmem, size = 0x12000, scoped, tag = 'internal scratch']
  %s0 = inlined_call_operand.vmem [shape: bf16[8,128], index: 0, kind: input, shape index: {}]
  %s1 = inlined_call_operand.hbm [shape: bf16[128,128], index: 1, kind: input, shape index: {}]
  %s2 = inlined_call_operand.vmem [shape: f32[1,128], index: 2, kind: input, shape index: {}]
  %s3 = inlined_call_operand.hbm [shape: bf16[128,128], index: 3, kind: input, shape index: {}]
  %s4 = inlined_call_operand.vmem [shape: f32[1,128], index: 4, kind: input, shape index: {}]
  %s5 = inlined_call_operand.vmem [shape: bf16[8,128], index: 5, kind: output, shape index: {0}]
  %s6 = inlined_call_operand.vmem [shape: bf16[8,128], index: 6, kind: output, shape index: {1}]
  %7 = xla_tuple %s5, %s6
  %s8 = sld [smem:[#allocation0]]
  $region46: #{mlp_forward.1} parent=0
    _
  %s10 = ssub.s32 1, %s8
  %s11 = scalar_select 0, %s10, %s8
  $region1: #{mlp_forward.1} parent=0
    #allocation2 [shape = 'u8[32768]{0}', space=vmem, size = 0x8000, scoped, tag = 'input window, operand 1, single buffered']
    #allocation3 [shape = 's32[1]{0}', space=sflag, size = 0x4, scoped, tag = 'scoped memory for mlp_forward.1']
    #allocation4 [shape = 'u8[32768]{0}', space=vmem, size = 0x8000, scoped, tag = 'input window, operand 3, single buffered']
    #allocation5 [shape = 's32[1]{0}', space=sflag, size = 0x4, scoped, tag = 'scoped memory for mlp_forward.1']
    %12 = vsyncpa [#allocation3], 0
    %13 = vsyncpa [#allocation5], 0
    // Predicated region
    $region2: #{mlp_forward.1} parent=1 // pred_check
      _
    $region3: #{mlp_forward.1} parent=1 // pred_check_branch
      %15 = sbr.rel (0) target = $region5
    $region4: #{mlp_forward.1} parent=1 // pred_region
      _
    $region5: #{mlp_forward.1} parent=1 // pred_fallthru
      _
    // Predicated region
    $region6: #{mlp_forward.1} parent=1 // pred_check
      _
    $region7: #{mlp_forward.1} parent=1 // pred_check_branch
      %17 = sbr.rel (0) target = $region9
    $region8: #{mlp_forward.1} parent=1 // pred_region
      %s19 = ssub.s32 1024, 1024
      %20 = vsyncadd [#allocation3], %s19
      %s21 = sshll.u32 [#allocation2], 4
      %s22 = int_to_ptr.vmem [resolvable:$true] %s21
      %27 = dma.hbm_to_vmem [thread:$0]  %s1, 1024, %s22, [#allocation3], 64, 64, 4
    $region9: #{mlp_forward.1} parent=1 // pred_fallthru
      _
    // Predicated region
    $region10: #{mlp_forward.1} parent=1 // pred_check
      _
    $region11: #{mlp_forward.1} parent=1 // pred_check_branch
      %29 = sbr.rel (0) target = $region13
    $region12: #{mlp_forward.1} parent=1 // pred_region
      _
    $region13: #{mlp_forward.1} parent=1 // pred_fallthru
      _
    // Predicated region
    $region14: #{mlp_forward.1} parent=1 // pred_check
      _
    $region15: #{mlp_forward.1} parent=1 // pred_check_branch
      %31 = sbr.rel (0) target = $region17
    $region16: #{mlp_forward.1} parent=1 // pred_region
      %s33 = ssub.s32 1024, 1024
      %34 = vsyncadd [#allocation5], %s33
      %s35 = sshll.u32 [#allocation4], 4
      %s36 = int_to_ptr.vmem [resolvable:$true] %s35
      %41 = dma.hbm_to_vmem [thread:$0]  %s3, 1024, %s36, [#allocation5], 64, 64, 4
    $region17: #{mlp_forward.1} parent=1 // pred_fallthru
      _
    // Predicated region
    $region18: #{mlp_forward.1} parent=1 // pred_check
      _
    $region19: #{mlp_forward.1} parent=1 // pred_check_branch
      %43 = sbr.rel (0) target = $region21
    $region20: #{mlp_forward.1} parent=1 // pred_region
      _
    $region21: #{mlp_forward.1} parent=1 // pred_fallthru
      _
    // Predicated region
    $region22: #{mlp_forward.1} parent=1 // pred_check
      _
    $region23: #{mlp_forward.1} parent=1 // pred_check_branch
      %45 = sbr.rel (0) target = $region25
    $region24: #{mlp_forward.1} parent=1 // pred_region
      %46 = dma.done [#allocation3], 1024
    $region25: #{mlp_forward.1} parent=1 // pred_fallthru
      _
    // Predicated region
    $region26: #{mlp_forward.1} parent=1 // pred_check
      _
    $region27: #{mlp_forward.1} parent=1 // pred_check_branch
      %48 = sbr.rel (0) target = $region29
    $region28: #{mlp_forward.1} parent=1 // pred_region
      %49 = dma.done [#allocation5], 1024
    $region29: #{mlp_forward.1} parent=1 // pred_fallthru
      _
    %v51 = vld [vmem:[%s0] sm:$0xf]
    %v52 = vld [vmem:[#allocation2] sm:$0xf]
    %v53 = vld [vmem:[#allocation2 + $0x4] sm:$0xf]
    %v54 = vld [vmem:[#allocation2 + $0x8] sm:$0xf]
    %v55 = vld [vmem:[#allocation2 + $0xc] sm:$0xf]
    %v56 = vld [vmem:[#allocation2 + $0x10] sm:$0xf]
    %v57 = vld [vmem:[#allocation2 + $0x14] sm:$0xf]
    %v58 = vld [vmem:[#allocation2 + $0x18] sm:$0xf]
    %v59 = vld [vmem:[#allocation2 + $0x1c] sm:$0xf]
    %v60 = vld [vmem:[#allocation2 + $0x20] sm:$0xf]
    %v61 = vld [vmem:[#allocation2 + $0x24] sm:$0xf]
    %v62 = vld [vmem:[#allocation2 + $0x28] sm:$0xf]
    %v63 = vld [vmem:[#allocation2 + $0x2c] sm:$0xf]
    %v64 = vld [vmem:[#allocation2 + $0x30] sm:$0xf]
    %v65 = vld [vmem:[#allocation2 + $0x34] sm:$0xf]
    %v66 = vld [vmem:[#allocation2 + $0x38] sm:$0xf]
    %v67 = vld [vmem:[#allocation2 + $0x3c] sm:$0xf]
    %v68 = vld [vmem:[%s2] sm:$0x1]
    %v70 = vlaneseq
    %v71 = vshrl.u32 %v70, 7
    %v72 = vsub.s32 0, %v71
    %v73 = vrot.slane %v68, %v72
    %v91 = vunpack.c.l.b16 %v52
    %v92 = vunpack.c.l.b16 %v53
    %v93 = vunpack.c.l.b16 %v54
    %v94 = vunpack.c.l.b16 %v55
    %v95 = vunpack.c.l.b16 %v56
    %v96 = vunpack.c.l.b16 %v57
    %v97 = vunpack.c.l.b16 %v58
    %v98 = vunpack.c.l.b16 %v59
    %v99 = vunpack.c.l.b16 %v60
    %v100 = vunpack.c.l.b16 %v61
    %v101 = vunpack.c.l.b16 %v62
    %v102 = vunpack.c.l.b16 %v63
    %v103 = vunpack.c.l.b16 %v64
    %v104 = vunpack.c.l.b16 %v65
    %v105 = vunpack.c.l.b16 %v66
    %v106 = vunpack.c.l.b16 %v67
    %v107 = vpack.c.b16 %v92, %v91
    %v108 = vpack.c.b16 %v94, %v93
    %v109 = vpack.c.b16 %v96, %v95
    %v110 = vpack.c.b16 %v98, %v97
    %v111 = vpack.c.b16 %v100, %v99
    %v112 = vpack.c.b16 %v102, %v101
    %v113 = vpack.c.b16 %v104, %v103
    %v114 = vpack.c.b16 %v106, %v105
    %123 = vmatprep.subr.bf16.mxu0 0
    %124 = vmatpush1.bf16.msra.mxu0 %v114
    %125 = vmatprep.subr.bf16.mxu0 0
    %126 = vmatpush1.bf16.msra.mxu0 %v113
    %127 = vmatprep.subr.bf16.mxu0 0
    %128 = vmatpush1.bf16.msra.mxu0 %v112
    %129 = vmatprep.subr.bf16.mxu0 0
    %130 = vmatpush1.bf16.msra.mxu0 %v111
    %131 = vmatprep.subr.bf16.mxu0 0
    %132 = vmatpush1.bf16.msra.mxu0 %v110
    %133 = vmatprep.subr.bf16.mxu0 0
    %134 = vmatpush1.bf16.msra.mxu0 %v109
    %135 = vmatprep.subr.bf16.mxu0 0
    %136 = vmatpush1.bf16.msra.mxu0 %v108
    %137 = vmatprep.subr.bf16.mxu0 0
    %138 = vmatpush1.bf16.msra.mxu0 %v107
    %139 = vmatprep.subr.bf16.mxu0 0
    %140 = vmatpush2.bf16.msra.mxu0 0
    %141 = vmatprep.subr.bf16.mxu0 0
    %142 = vmatpush2.bf16.msra.mxu0 0
    %143 = vmatprep.subr.bf16.mxu0 0
    %144 = vmatpush2.bf16.msra.mxu0 0
    %145 = vmatprep.subr.bf16.mxu0 0
    %146 = vmatpush2.bf16.msra.mxu0 0
    %147 = vmatprep.subr.bf16.mxu0 0
    %148 = vmatpush2.bf16.msra.mxu0 0
    %149 = vmatprep.subr.bf16.mxu0 0
    %150 = vmatpush2.bf16.msra.mxu0 0
    %151 = vmatprep.subr.bf16.mxu0 0
    %152 = vmatpush2.bf16.msra.mxu0 0
    %153 = vmatprep.subr.bf16.mxu0 0
    %154 = vmatpush2.bf16.msra.mxu0 0
    %155 = vmatprep.mubr.bf16.mxu0 0
    %156 = vmatmul.mubr.bf16.gmra.mxu0 %v51
    %v157 = vpop.f32.mrf.mxu0
    %v158 = vadd.f32 %v73, %v157
    %v159 = vpop.f32.mrf.mxu0
    %v160 = vpop.f32.mrf.mxu0
    %v161 = vpop.f32.mrf.mxu0
    %162 = vdwg.mxu0
    %v163 = vmax.f32 %v158, 0.0
    %v164 = vmin.f32 %v163, 6.0
    %v165 = vpack.c.bf16 %v164, %v164
    %166 = vst [vmem:[%s6] sm:$0xf] %v165
    %v167 = vld [vmem:[#allocation4] sm:$0xf]
    %v168 = vld [vmem:[#allocation4 + $0x4] sm:$0xf]
    %v169 = vld [vmem:[#allocation4 + $0x8] sm:$0xf]
    %v170 = vld [vmem:[#allocation4 + $0xc] sm:$0xf]
    %v171 = vld [vmem:[#allocation4 + $0x10] sm:$0xf]
    %v172 = vld [vmem:[#allocation4 + $0x14] sm:$0xf]
    %v173 = vld [vmem:[#allocation4 + $0x18] sm:$0xf]
    %v174 = vld [vmem:[#allocation4 + $0x1c] sm:$0xf]
    %v175 = vld [vmem:[#allocation4 + $0x20] sm:$0xf]
    %v176 = vld [vmem:[#allocation4 + $0x24] sm:$0xf]
    %v177 = vld [vmem:[#allocation4 + $0x28] sm:$0xf]
    %v178 = vld [vmem:[#allocation4 + $0x2c] sm:$0xf]
    %v179 = vld [vmem:[#allocation4 + $0x30] sm:$0xf]
    %v180 = vld [vmem:[#allocation4 + $0x34] sm:$0xf]
    %v181 = vld [vmem:[#allocation4 + $0x38] sm:$0xf]
    %v182 = vld [vmem:[#allocation4 + $0x3c] sm:$0xf]
    %v183 = vld [vmem:[%s4] sm:$0x1]
    %v185 = vlaneseq
    %v186 = vshrl.u32 %v185, 7
    %v187 = vsub.s32 0, %v186
    %v188 = vrot.slane %v183, %v187
    %v206 = vunpack.c.l.b16 %v167
    %v207 = vunpack.c.l.b16 %v168
    %v208 = vunpack.c.l.b16 %v169
    %v209 = vunpack.c.l.b16 %v170
    %v210 = vunpack.c.l.b16 %v171
    %v211 = vunpack.c.l.b16 %v172
    %v212 = vunpack.c.l.b16 %v173
    %v213 = vunpack.c.l.b16 %v174
    %v214 = vunpack.c.l.b16 %v175
    %v215 = vunpack.c.l.b16 %v176
    %v216 = vunpack.c.l.b16 %v177
    %v217 = vunpack.c.l.b16 %v178
    %v218 = vunpack.c.l.b16 %v179
    %v219 = vunpack.c.l.b16 %v180
    %v220 = vunpack.c.l.b16 %v181
    %v221 = vunpack.c.l.b16 %v182
    %v222 = vpack.c.b16 %v207, %v206
    %v223 = vpack.c.b16 %v209, %v208
    %v224 = vpack.c.b16 %v211, %v210
    %v225 = vpack.c.b16 %v213, %v212
    %v226 = vpack.c.b16 %v215, %v214
    %v227 = vpack.c.b16 %v217, %v216
    %v228 = vpack.c.b16 %v219, %v218
    %v229 = vpack.c.b16 %v221, %v220
    %238 = vmatprep.subr.bf16.mxu0 0
    %239 = vmatpush1.bf16.msra.mxu0 %v229
    %240 = vmatprep.subr.bf16.mxu0 0
    %241 = vmatpush1.bf16.msra.mxu0 %v228
    %242 = vmatprep.subr.bf16.mxu0 0
    %243 = vmatpush1.bf16.msra.mxu0 %v227
    %244 = vmatprep.subr.bf16.mxu0 0
    %245 = vmatpush1.bf16.msra.mxu0 %v226
    %246 = vmatprep.subr.bf16.mxu0 0
    %247 = vmatpush1.bf16.msra.mxu0 %v225
    %248 = vmatprep.subr.bf16.mxu0 0
    %249 = vmatpush1.bf16.msra.mxu0 %v224
    %250 = vmatprep.subr.bf16.mxu0 0
    %251 = vmatpush1.bf16.msra.mxu0 %v223
    %252 = vmatprep.subr.bf16.mxu0 0
    %253 = vmatpush1.bf16.msra.mxu0 %v222
    %254 = vmatprep.subr.bf16.mxu0 0
    %255 = vmatpush2.bf16.msra.mxu0 0
    %256 = vmatprep.subr.bf16.mxu0 0
    %257 = vmatpush2.bf16.msra.mxu0 0
    %258 = vmatprep.subr.bf16.mxu0 0
    %259 = vmatpush2.bf16.msra.mxu0 0
    %260 = vmatprep.subr.bf16.mxu0 0
    %261 = vmatpush2.bf16.msra.mxu0 0
    %262 = vmatprep.subr.bf16.mxu0 0
    %263 = vmatpush2.bf16.msra.mxu0 0
    %264 = vmatprep.subr.bf16.mxu0 0
    %265 = vmatpush2.bf16.msra.mxu0 0
    %266 = vmatprep.subr.bf16.mxu0 0
    %267 = vmatpush2.bf16.msra.mxu0 0
    %268 = vmatprep.subr.bf16.mxu0 0
    %269 = vmatpush2.bf16.msra.mxu0 0
    %270 = vmatprep.mubr.bf16.mxu0 0
    %271 = vmatmul.mubr.bf16.gmra.mxu0 %v165
    %v272 = vpop.f32.mrf.mxu0
    %v273 = vadd.f32 %v188, %v272
    %v274 = vpop.f32.mrf.mxu0
    %v275 = vpop.f32.mrf.mxu0
    %v276 = vpop.f32.mrf.mxu0
    %277 = vdwg.mxu0
    %v278 = vmax.f32 %v273, 0.0
    %v279 = vmin.f32 %v278, 6.0
    %v280 = vpack.c.bf16 %v279, %v279
    %281 = vst [vmem:[%s5] sm:$0xf] %v280
    // Predicated region
    $region30: #{mlp_forward.1} parent=1 // pred_check
      _
    $region31: #{mlp_forward.1} parent=1 // pred_check_branch
      %283 = sbr.rel (0) target = $region33
    $region32: #{mlp_forward.1} parent=1 // pred_region
      _
    $region33: #{mlp_forward.1} parent=1 // pred_fallthru
      _
    // Predicated region
    $region34: #{mlp_forward.1} parent=1 // pred_check
      _
    $region35: #{mlp_forward.1} parent=1 // pred_check_branch
      %285 = sbr.rel (0) target = $region37
    $region36: #{mlp_forward.1} parent=1 // pred_region
      _
    $region37: #{mlp_forward.1} parent=1 // pred_fallthru
      _
    // Predicated region
    $region38: #{mlp_forward.1} parent=1 // pred_check
      _
    $region39: #{mlp_forward.1} parent=1 // pred_check_branch
      %287 = sbr.rel (0) target = $region41
    $region40: #{mlp_forward.1} parent=1 // pred_region
      _
    $region41: #{mlp_forward.1} parent=1 // pred_fallthru
      _
    // Predicated region
    $region42: #{mlp_forward.1} parent=1 // pred_check
      _
    $region43: #{mlp_forward.1} parent=1 // pred_check_branch
      %289 = sbr.rel (0) target = $region45
    $region44: #{mlp_forward.1} parent=1 // pred_region
      _
    $region45: #{mlp_forward.1} parent=1 // pred_fallthru
      _
    %290 = vsyncpa [#allocation3], 1
    %291 = vsyncpa [#allocation5], 1

</llo_original>
